<compile_context>
chip_gen: v7x
topology: tpu7x:2x2x1
jax: 0.10.0
libtpu: 0.0.40
codegen_flags: <defaults>
</compile_context>

<pallas_src>
import jax
import jax.numpy as jnp
from jax.experimental import pallas as pl
from jax.experimental.pallas import tpu as pltpu

_LANE = 128
_MAX_LANES = 8192                       # widest lane-dense reshape we try
_TARGET_BLOCK_BYTES = 2 * 1024 * 1024   # ~2 MiB blocks; 4x = 8 MiB VMEM w/ dbl buffer


def _identity_kernel(x_ref, o_ref):
    # Whole-tile pass-through (pure streaming copy; HBM-bandwidth bound).
    o_ref[...] = x_ref[...]


def _sublanes(itemsize: int) -> int:
    # (8,128) tile for 4-byte dtypes, (16,128) for 2-byte, (32,128) for 1-byte.
    return max(8, 32 // itemsize)


def _choose_lanes(total: int, itemsize: int) -> int:
    """Largest multiple of 128 (<= _MAX_LANES) dividing `total`, preferring a
    view with at least one full sublane tile of rows."""
    sub = _sublanes(itemsize)
    cap = min(_MAX_LANES, max(_LANE, ((total // sub) // _LANE) * _LANE))
    for lanes in range(cap, _LANE - 1, -_LANE):
        if total % lanes == 0:
            return lanes
    return _LANE  # unreachable when total % 128 == 0


def _choose_block_rows(rows: int, lanes: int, itemsize: int) -> int:
    sub = _sublanes(itemsize)
    if rows <= sub:
        return rows  # block == full dim: exempt from the (8,128) rule
    target = max(1, _TARGET_BLOCK_BYTES // (lanes * itemsize))
    br = max(sub, (target // sub) * sub)
    if br >= rows:
        # Guarantee >= 2 grid steps so v7x's two TensorCores both get work.
        half = -(-rows // 2)
        br = max(sub, ((half + sub - 1) // sub) * sub)
    # Never exceed the array extent rounded up to the sublane tile.
    return min(br, ((rows + sub - 1) // sub) * sub)


def _tiled_identity_copy(x2d: jax.Array) -> jax.Array:
    """Tiled, pipelined, lane-dense identity copy of a (rows, lanes) array."""
    rows, lanes = x2d.shape
    itemsize = jnp.dtype(x2d.dtype).itemsize
    block_rows = _choose_block_rows(rows, lanes, itemsize)
    grid = (pl.cdiv(rows, block_rows),)
    return pl.pallas_call(
        _identity_kernel,
        out_shape=jax.ShapeDtypeStruct(x2d.shape, x2d.dtype),
        grid=grid,
        in_specs=[pl.BlockSpec((block_rows, lanes), lambda i: (i, 0))],
        out_specs=pl.BlockSpec((block_rows, lanes), lambda i: (i, 0)),
        compiler_params=pltpu.CompilerParams(
            # Near-zero effect on 1-TC v5e/v6e; shards grid steps across v7x's
            # two TensorCores.
            dimension_semantics=("parallel",),
        ),
    )(x2d)


def base_model_forward(x: jax.Array) -> jax.Array:
    """BaseModel.forward semantics (identity) -- true zero-cost no-op."""
    return x


@jax.jit
def base_model_forward_pallas(x: jax.Array) -> jax.Array:
    """Identity pass-through as a tuned Pallas kernel (API-parity path)."""
    total = x.size
    if total == 0:
        return x

    itemsize = jnp.dtype(x.dtype).itemsize
    flat = x.reshape(total)

    if total % _LANE == 0:
        lanes = _choose_lanes(total, itemsize)
        y2d = _tiled_identity_copy(flat.reshape(total // lanes, lanes))
        return y2d.reshape(x.shape)

    # Awkward size: pad the flat view to a lane multiple (<= 127 extra
    # elements), run the same bounded tiled path, then slice back.
    padded = ((total + _LANE - 1) // _LANE) * _LANE
    flat_p = jnp.pad(flat, (0, padded - total))
    lanes = _choose_lanes(padded, itemsize)
    y2d = _tiled_identity_copy(flat_p.reshape(padded // lanes, lanes))
    return y2d.reshape(padded)[:total].reshape(x.shape)


if __name__ == "__main__":
    key = jax.random.PRNGKey(0)
    # Small NCHW-style input consistent with a typical conv-model entry point.
    x = jax.random.normal(key, (2, 4, 16, 16), dtype=jnp.float32)

    # Zero-cost identity path (highest-value optimization per review).
    y0 = jax.block_until_ready(base_model_forward(x))
    assert y0.shape == x.shape and y0.dtype == x.dtype
    assert bool(jnp.array_equal(y0, x))

    # Pallas kernel path (lane-dense, tiled, pipelined copy).
    y1 = jax.block_until_ready(base_model_forward_pallas(x))
    assert y1.shape == x.shape and y1.dtype == x.dtype
    assert bool(jnp.array_equal(y1, x))

    # Awkward (non-multiple-of-128) size exercises the bounded padded path.
    x_odd = jax.random.normal(jax.random.PRNGKey(1), (3, 5, 7), dtype=jnp.float32)
    y2 = jax.block_until_ready(base_model_forward_pallas(x_odd))
    assert y2.shape == x_odd.shape and bool(jnp.array_equal(y2, x_odd))

    print("KERNEL_OK")
</pallas_src>

<mosaic_0001>
module attributes {stable_mosaic.version = 11 : i64} {
  func.func @_identity_kernel(%arg0: i32, %arg1: memref<8x256xf32, #tpu.memory_space<vmem>>, %arg2: memref<8x256xf32, #tpu.memory_space<vmem>>) attributes {dimension_semantics = [#tpu.dimension_semantics<parallel>], iteration_bounds = array<i64: 1>, scalar_prefetch = 0 : i64, scratch_operands = 0 : i64, tpu.core_type = #tpu.core_type<tc>, window_params = [{transform_indices = @transform_0, window_bounds = array<i64: 8, 256>}, {transform_indices = @transform_1, window_bounds = array<i64: 8, 256>}]} {
    %c0 = arith.constant 0 : index
    %c0_0 = arith.constant 0 : index
    %0 = vector.load %arg1[%c0, %c0_0] : memref<8x256xf32, #tpu.memory_space<vmem>>, vector<8x256xf32>
    %c0_1 = arith.constant 0 : index
    %c0_2 = arith.constant 0 : index
    %1 = vector.load %arg2[%c0_1, %c0_2] : memref<8x256xf32, #tpu.memory_space<vmem>>, vector<8x256xf32>
    tpu.vector_store %arg2[%c0_1, %c0_2], %0 {strides = array<i32>} : memref<8x256xf32, #tpu.memory_space<vmem>>, vector<8x256xf32>,
    return
  }
  func.func @transform_0(%arg0: i32) -> (i32, i32) {
    %c0_i32 = arith.constant 0 : i32
    %c0_i32_0 = arith.constant 0 : i32
    return %arg0, %c0_i32 : i32, i32
  }
  func.func @transform_1(%arg0: i32) -> (i32, i32) {
    %c0_i32 = arith.constant 0 : i32
    %c0_i32_0 = arith.constant 0 : i32
    return %arg0, %c0_i32 : i32, i32
  }
}

</mosaic_0001>

<llo_original>
// kernel: base_model_forward_pallas.1
$region0: #{base_model_forward_pallas.1}
  #allocation0 [shape = 'u32[]', space=smem, size = 0x4, offset = 0x4, fixed_abs, tag = 'smem constant byte address 0x4 - core index']
  #allocation1 [shape = 'u32[144,128]{1,0:T(1,128)}', space=vmem, size = 0x12000, scoped, tag = 'internal scratch']
  %s0 = inlined_call_operand.vmem [shape: f32[8,256], index: 0, kind: input, shape index: {}]
  %s1 = inlined_call_operand.vmem [shape: f32[8,256], index: 1, kind: output, shape index: {}]
  %s2 = sld [smem:[#allocation0]]
  $region14: #{base_model_forward_pallas.1} parent=0
    _
  %s4 = ssub.s32 1, %s2
  %s5 = scalar_select 0, %s4, %s2
  // Predicated region
  $region2: #{base_model_forward_pallas.1} parent=0 // pred_check
    _
  $region3: #{base_model_forward_pallas.1} parent=0 // pred_check_branch
    %7 = sbr.rel (0) target = $region5
  $region4: #{base_model_forward_pallas.1} parent=0 // pred_region
    _
  $region5: #{base_model_forward_pallas.1} parent=0 // pred_fallthru
    _
  %v8 = vld [vmem:[%s0] sm:$0xff]
  %v9 = vld [vmem:[%s0 + $0x8] sm:$0xff]
  %10 = vst [vmem:[%s1] sm:$0xff] %v8
  %11 = vst [vmem:[%s1 + $0x8] sm:$0xff] %v9
  // Predicated region
  $region6: #{base_model_forward_pallas.1} parent=0 // pred_check
    _
  $region7: #{base_model_forward_pallas.1} parent=0 // pred_check_branch
    %13 = sbr.rel (0) target = $region9
  $region8: #{base_model_forward_pallas.1} parent=0 // pred_region
    _
  $region9: #{base_model_forward_pallas.1} parent=0 // pred_fallthru
    _
  // Predicated region
  $region10: #{base_model_forward_pallas.1} parent=0 // pred_check
    _
  $region11: #{base_model_forward_pallas.1} parent=0 // pred_check_branch
    %15 = sbr.rel (0) target = $region13
  $region12: #{base_model_forward_pallas.1} parent=0 // pred_region
    _
  $region13: #{base_model_forward_pallas.1} parent=0 // pred_fallthru
    _

</llo_original>
